<compile_context>
chip_gen: v7x
topology: tpu7x:2x2x1
jax: 0.10.0
libtpu: 0.0.40
codegen_flags: <defaults>
</compile_context>

<pallas_src>
import math

import jax
import jax.numpy as jnp
from jax import lax
from jax.experimental import pallas as pl
from jax.experimental.pallas import tpu as pltpu

EPS = 1e-5  # matches torch.nn.LayerNorm default


def _layernorm(x, gamma, beta):
    # x: (..., C); gamma/beta broadcastable over the last dim; all f32.
    mean = jnp.mean(x, axis=-1, keepdims=True)
    var = jnp.mean(jnp.square(x - mean), axis=-1, keepdims=True)
    return (x - mean) * lax.rsqrt(var + EPS) * gamma + beta


# ---------------------------------------------------------------------------
# Kernel 1: fused LayerNorm(pair) + bias projection, emitted directly as (H, Tm)
# ---------------------------------------------------------------------------
def bias_kernel(z_ref, gz_ref, bz_ref, wb_ref, o_ref):
    # z_ref: (Tm, Cz), wb_ref: (Cz, H)  ->  o_ref: (H, Tm)
    zn = _layernorm(z_ref[...], gz_ref[...], bz_ref[...]).astype(wb_ref.dtype)
    # Contract Cz of (Cz, H) against Cz of (Tm, Cz): the MXU emits (H, Tm) directly,
    # lane-dense along Tm — no XLU transpose of a lane-narrow (Tm, H) intermediate.
    b = lax.dot_general(wb_ref[...], zn, (((0,), (1,)), ((), ())),
                        preferred_element_type=jnp.float32)
    o_ref[...] = b.astype(o_ref.dtype)


# ---------------------------------------------------------------------------
# Kernel 2: fused LN + Q/K/V/Gate proj + per-head attention + gate + output proj
# ---------------------------------------------------------------------------
def make_fused_kernel(H, D, compute_dtype):
    def fused_kernel(m_ref, gm_ref, bm_ref, wq_ref, wk_ref, wv_ref, wg_ref, bg_ref,
                     bias_ref, wo_ref, bo_ref, o_ref, att_ref):
        # One MSA row per grid step.  m_ref/o_ref: (L, Cm); att_ref scratch: (L, HD) f32.
        mn = _layernorm(m_ref[...], gm_ref[...], bm_ref[...]).astype(compute_dtype)
        # norm_factor is pre-folded into wq in the wrapper.
        q = jnp.dot(mn, wq_ref[...], preferred_element_type=jnp.float32)      # (L, HD)
        k = jnp.dot(mn, wk_ref[...], preferred_element_type=jnp.float32)
        v = jnp.dot(mn, wv_ref[...],
                    preferred_element_type=jnp.float32).astype(compute_dtype)
        g = jax.nn.sigmoid(
            jnp.dot(mn, wg_ref[...], preferred_element_type=jnp.float32) + bg_ref[...])

        for h in range(H):                                   # static unroll over heads
            qh = q[:, h * D:(h + 1) * D].astype(compute_dtype)   # (L, D)
            kh = k[:, h * D:(h + 1) * D].astype(compute_dtype)
            vh = v[:, h * D:(h + 1) * D]
            # QK^T: contract last dims, no in-kernel relayout of k.
            s = lax.dot_general(qh, kh, (((1,), (1,)), ((), ())),
                                preferred_element_type=jnp.float32)           # (L, L)
            s = s + bias_ref[h].astype(jnp.float32)
            s = s - jnp.max(s, axis=-1, keepdims=True)
            p = jnp.exp(s)
            row_sum = jnp.sum(p, axis=-1, keepdims=True)                      # (L, 1)
            # Deferred normalization: PV on unnormalized p, scale the (L, D) output.
            oh = jnp.dot(p.astype(compute_dtype), vh,
                         preferred_element_type=jnp.float32)                  # (L, D)
            att_ref[:, h * D:(h + 1) * D] = oh * pl.reciprocal(row_sum, approx=True)

        att = att_ref[...] * g                                                # (L, HD)
        o_ref[...] = (jnp.dot(att.astype(compute_dtype), wo_ref[...],
                              preferred_element_type=jnp.float32) + bo_ref[...])
    return fused_kernel


# ---------------------------------------------------------------------------
# Tiling helpers
# ---------------------------------------------------------------------------
def _bias_tiles(M, cap=8192):
    """Tile size along the flattened L*L axis and number of grid steps."""
    if M <= cap:
        return M, 1
    t = (cap // 128) * 128
    while t >= 128:
        if M % t == 0:
            return t, M // t
        t -= 128
    # No multiple-of-128 divisor <= cap: partial final tile (Pallas pads boundary
    # reads / masks boundary writes) instead of one giant block that could blow VMEM.
    t = (cap // 128) * 128
    return t, pl.cdiv(M, t)


# ---------------------------------------------------------------------------
# Wrapper
# ---------------------------------------------------------------------------
def msa_row_att(msa, pair, params, no_heads, hidden_dim, *,
                compute_dtype=jnp.bfloat16):
    R, L, Cm = msa.shape
    _, _, Cz = pair.shape
    H, D = no_heads, hidden_dim
    HD = H * D
    norm_factor = 1.0 / math.sqrt(D)
    cdt = compute_dtype
    cbytes = jnp.dtype(cdt).itemsize

    # LayerNorm params and additive biases stay f32.
    gm = params["gamma_m"].reshape(1, Cm).astype(jnp.float32)
    bm = params["beta_m"].reshape(1, Cm).astype(jnp.float32)
    gz = params["gamma_z"].reshape(1, Cz).astype(jnp.float32)
    bz = params["beta_z"].reshape(1, Cz).astype(jnp.float32)
    bg = params["b_gate"].reshape(1, HD).astype(jnp.float32)
    bo = params["b_out"].reshape(1, Cm).astype(jnp.float32)

    # MXU-operand weights in compute_dtype; fold the q scale into w_q once here.
    w_q = (params["w_q"] * norm_factor).astype(cdt)
    w_k = params["w_k"].astype(cdt)
    w_v = params["w_v"].astype(cdt)
    w_g = params["w_gate"].astype(cdt)
    w_o = params["w_out"].astype(cdt)
    w_b = params["w_bias"].astype(cdt)

    # ---- 1) pair bias, produced directly in (H, L*L) layout & compute_dtype ----
    LL = L * L
    Tm, steps = _bias_tiles(LL)
    pair_flat = pair.reshape(LL, Cz)                  # contiguous, free at XLA level
    bias_hm = pl.pallas_call(
        bias_kernel,
        out_shape=jax.ShapeDtypeStruct((H, LL), cdt),
        grid=(steps,),
        in_specs=[
            pl.BlockSpec((Tm, Cz), lambda i: (i, 0)),
            pl.BlockSpec((1, Cz), lambda i: (0, 0)),
            pl.BlockSpec((1, Cz), lambda i: (0, 0)),
            pl.BlockSpec((Cz, H), lambda i: (0, 0)),
        ],
        out_specs=pl.BlockSpec((H, Tm), lambda i: (0, i)),
        compiler_params=pltpu.CompilerParams(dimension_semantics=("parallel",)),
    )(pair_flat, gz, bz, w_b)
    pair_bias = bias_hm.reshape(H, L, L)              # contiguous, free at XLA level

    # ---- 2) fused per-row kernel: LN + proj + attention + gate + out proj ----
    # Explicit VMEM budget: row in/out blocks (x2 buffers), weights (x2), bias
    # (worst-case x2 buffers), scratch slab, plus headroom for (L, L) score tiles.
    est = (2 * 2 * L * Cm * 4
           + 2 * 5 * Cm * HD * cbytes
           + 2 * H * L * L * cbytes
           + L * HD * 4
           + 4 * L * L * 4)
    vmem_limit = int(min(max(est + (8 << 20), 32 << 20), 96 << 20))

    def build_and_call(single_buffer_bias):
        bias_kwargs = dict(pipeline_mode=pl.Buffered(1)) if single_buffer_bias else {}
        return pl.pallas_call(
            make_fused_kernel(H, D, cdt),
            out_shape=jax.ShapeDtypeStruct((R, L, Cm), jnp.float32),
            grid=(R,),
            in_specs=[
                pl.BlockSpec((None, L, Cm), lambda r: (r, 0, 0)),
                pl.BlockSpec((1, Cm), lambda r: (0, 0)),
                pl.BlockSpec((1, Cm), lambda r: (0, 0)),
                pl.BlockSpec((Cm, HD), lambda r: (0, 0)),
                pl.BlockSpec((Cm, HD), lambda r: (0, 0)),
                pl.BlockSpec((Cm, HD), lambda r: (0, 0)),
                pl.BlockSpec((Cm, HD), lambda r: (0, 0)),
                pl.BlockSpec((1, HD), lambda r: (0, 0)),
                # Constant block index: bias DMA'd once for the whole grid;
                # Buffered(1) additionally drops its second (never used) VMEM buffer.
                pl.BlockSpec((H, L, L), lambda r: (0, 0, 0), **bias_kwargs),
                pl.BlockSpec((HD, Cm), lambda r: (0, 0)),
                pl.BlockSpec((1, Cm), lambda r: (0, 0)),
            ],
            out_specs=pl.BlockSpec((None, L, Cm), lambda r: (r, 0, 0)),
            scratch_shapes=[pltpu.VMEM((L, HD), jnp.float32)],
            compiler_params=pltpu.CompilerParams(
                dimension_semantics=("parallel",),
                vmem_limit_bytes=vmem_limit),
        )(msa, gm, bm, w_q, w_k, w_v, w_g, bg, pair_bias, w_o, bo)

    try:
        return build_and_call(True)
    except Exception:
        # This JAX build rejects pipeline_mode=pl.Buffered(1) on the outer pipeline;
        # fall back to the default (double-buffered) bias spec.
        return build_and_call(False)


# ---------------------------------------------------------------------------
# Pure-JAX reference (mirrors the PyTorch forward exactly, f32 throughout)
# ---------------------------------------------------------------------------
def reference(msa, pair, params, H, D):
    R, L, Cm = msa.shape
    mn = _layernorm(msa, params["gamma_m"][None], params["beta_m"][None])
    zn = _layernorm(pair, params["gamma_z"][None], params["beta_z"][None])
    q = (mn @ params["w_q"]).reshape(R, L, H, D) * (1.0 / math.sqrt(D))
    k = (mn @ params["w_k"]).reshape(R, L, H, D)
    v = (mn @ params["w_v"]).reshape(R, L, H, D)
    gate = jax.nn.sigmoid(mn @ params["w_gate"] + params["b_gate"]).reshape(R, L, H, D)
    bias = jnp.transpose(zn @ params["w_bias"], (2, 0, 1))[None]     # (1, H, L, L)
    att = jnp.einsum("rihd,rjhd->rhij", q, k) + bias
    att = jax.nn.softmax(att, axis=-1)
    out = jnp.einsum("rhij,rjhd->rihd", att, v) * gate
    out = out.reshape(R, L, H * D)
    return out @ params["w_out"] + params["b_out"]


if __name__ == "__main__":
    R, L = 2, 16            # num_seqs, length
    msa_dim, pair_dim = 32, 16
    H, D = 4, 8             # no_heads, hidden_dim

    key = jax.random.PRNGKey(0)
    ks = jax.random.split(key, 14)

    def nrm(k_, shape, scale=0.1):
        return scale * jax.random.normal(k_, shape, dtype=jnp.float32)

    params = {
        "gamma_m": 1.0 + nrm(ks[0], (msa_dim,)),
        "beta_m":  nrm(ks[1], (msa_dim,)),
        "gamma_z": 1.0 + nrm(ks[2], (pair_dim,)),
        "beta_z":  nrm(ks[3], (pair_dim,)),
        "w_bias":  nrm(ks[4], (pair_dim, H)),
        "w_q":     nrm(ks[5], (msa_dim, H * D)),
        "w_k":     nrm(ks[6], (msa_dim, H * D)),
        "w_v":     nrm(ks[7], (msa_dim, H * D)),
        "w_gate":  nrm(ks[8], (msa_dim, H * D)),
        "b_gate":  nrm(ks[9], (H * D,)),
        "w_out":   nrm(ks[10], (H * D, msa_dim)),
        "b_out":   nrm(ks[11], (msa_dim,)),
    }

    msa = jax.random.normal(ks[12], (R, L, msa_dim), dtype=jnp.float32)
    pair = jax.random.normal(ks[13], (L, L, pair_dim), dtype=jnp.float32)

    ref = reference(msa, pair, params, H, D)

    # f32-operand path: numerically tight against the reference.
    out_f32 = msa_row_att(msa, pair, params, H, D, compute_dtype=jnp.float32)
    out_f32 = jax.block_until_ready(out_f32)
    assert out_f32.shape == (R, L, msa_dim)
    assert jnp.allclose(out_f32, ref, rtol=1e-3, atol=1e-3), "f32 path mismatch vs. reference"

    # Default performance configuration: bf16 MXU operands, f32 accumulation.
    out_bf16 = msa_row_att(msa, pair, params, H, D)
    out_bf16 = jax.block_until_ready(out_bf16)
    assert out_bf16.shape == (R, L, msa_dim)
    assert jnp.allclose(out_bf16, ref, rtol=2e-2, atol=2e-2), "bf16 path mismatch vs. reference"

    print("KERNEL_OK")
</pallas_src>

<mosaic_0001>
module attributes {stable_mosaic.version = 11 : i64} {
  func.func @bias_kernel(%arg0: i32, %arg1: memref<256x16xf32, #tpu.memory_space<vmem>>, %arg2: memref<1x16xf32, #tpu.memory_space<vmem>>, %arg3: memref<1x16xf32, #tpu.memory_space<vmem>>, %arg4: memref<16x4xf32, #tpu.memory_space<vmem>>, %arg5: memref<4x256xf32, #tpu.memory_space<vmem>>) attributes {dimension_semantics = [#tpu.dimension_semantics<parallel>], iteration_bounds = array<i64: 1>, scalar_prefetch = 0 : i64, scratch_operands = 0 : i64, tpu.core_type = #tpu.core_type<tc>, window_params = [{transform_indices = @transform_0, window_bounds = array<i64: 256, 16>}, {pipeline_mode = #tpu.pipeline_mode<synchronous>, transform_indices = @transform_1, window_bounds = array<i64: 1, 16>}, {pipeline_mode = #tpu.pipeline_mode<synchronous>, transform_indices = @transform_2, window_bounds = array<i64: 1, 16>}, {pipeline_mode = #tpu.pipeline_mode<synchronous>, transform_indices = @transform_3, window_bounds = array<i64: 16, 4>}, {transform_indices = @transform_4, window_bounds = array<i64: 4, 256>}]} {
    %c0 = arith.constant 0 : index
    %c0_0 = arith.constant 0 : index
    %0 = vector.load %arg1[%c0, %c0_0] : memref<256x16xf32, #tpu.memory_space<vmem>>, vector<256x16xf32>
    %c0_1 = arith.constant 0 : index
    %c0_2 = arith.constant 0 : index
    %1 = vector.load %arg2[%c0_1, %c0_2] : memref<1x16xf32, #tpu.memory_space<vmem>>, vector<1x16xf32>
    %c0_3 = arith.constant 0 : index
    %c0_4 = arith.constant 0 : index
    %2 = vector.load %arg3[%c0_3, %c0_4] : memref<1x16xf32, #tpu.memory_space<vmem>>, vector<1x16xf32>
    %cst = arith.constant dense<0.000000e+00> : vector<256xf32>
    %3 = vector.multi_reduction <add>, %0, %cst [1] : vector<256x16xf32> to vector<256xf32>
    %4 = vector.shape_cast %3 : vector<256xf32> to vector<256x1xf32>
    %cst_5 = arith.constant 1.600000e+01 : f32
    %5 = vector.broadcast %cst_5 : f32 to vector<256x1xf32>
    %6 = arith.divf %4, %5 : vector<256x1xf32>
    %7 = vector.broadcast %6 : vector<256x1xf32> to vector<256x16xf32>
    %8 = arith.subf %0, %7 : vector<256x16xf32>
    %9 = arith.mulf %8, %8 : vector<256x16xf32>
    %cst_6 = arith.constant dense<0.000000e+00> : vector<256xf32>
    %10 = vector.multi_reduction <add>, %9, %cst_6 [1] : vector<256x16xf32> to vector<256xf32>
    %11 = vector.shape_cast %10 : vector<256xf32> to vector<256x1xf32>
    %cst_7 = arith.constant 1.600000e+01 : f32
    %12 = vector.broadcast %cst_7 : f32 to vector<256x1xf32>
    %13 = arith.divf %11, %12 : vector<256x1xf32>
    %14 = vector.broadcast %6 : vector<256x1xf32> to vector<256x16xf32>
    %15 = arith.subf %0, %14 : vector<256x16xf32>
    %cst_8 = arith.constant 9.99999974E-6 : f32
    %16 = vector.broadcast %cst_8 : f32 to vector<256x1xf32>
    %17 = arith.addf %13, %16 : vector<256x1xf32>
    %18 = math.rsqrt %17 : vector<256x1xf32>
    %19 = vector.broadcast %18 : vector<256x1xf32> to vector<256x16xf32>
    %20 = arith.mulf %15, %19 : vector<256x16xf32>
    %21 = vector.broadcast %1 : vector<1x16xf32> to vector<256x16xf32>
    %22 = arith.mulf %20, %21 : vector<256x16xf32>
    %23 = vector.broadcast %2 : vector<1x16xf32> to vector<256x16xf32>
    %24 = arith.addf %22, %23 : vector<256x16xf32>
    %c0_9 = arith.constant 0 : index
    %c0_10 = arith.constant 0 : index
    %25 = vector.load %arg4[%c0_9, %c0_10] : memref<16x4xf32, #tpu.memory_space<vmem>>, vector<16x4xf32>
    %cst_11 = arith.constant dense<0.000000e+00> : vector<4x256xf32>
    %26 = tpu.matmul %25, %24, %cst_11 {dimension_numbers = #tpu.dot_dimension_numbers<[0], [1], [1], [0], [0, 1, 1, 0], [], []>} : vector<16x4xf32>, vector<256x16xf32>, vector<4x256xf32> -> vector<4x256xf32>
    %c0_12 = arith.constant 0 : index
    %c0_13 = arith.constant 0 : index
    %27 = vector.load %arg5[%c0_12, %c0_13] : memref<4x256xf32, #tpu.memory_space<vmem>>, vector<4x256xf32>
    tpu.vector_store %arg5[%c0_12, %c0_13], %26 {strides = array<i32>} : memref<4x256xf32, #tpu.memory_space<vmem>>, vector<4x256xf32>,
    return
  }
  func.func @transform_0(%arg0: i32) -> (i32, i32) {
    %c0_i32 = arith.constant 0 : i32
    %c0_i32_0 = arith.constant 0 : i32
    return %arg0, %c0_i32 : i32, i32
  }
  func.func @transform_1(%arg0: i32) -> (i32, i32) {
    %c0_i32 = arith.constant 0 : i32
    %c0_i32_0 = arith.constant 0 : i32
    %c0_i32_1 = arith.constant 0 : i32
    return %c0_i32, %c0_i32_0 : i32, i32
  }
  func.func @transform_2(%arg0: i32) -> (i32, i32) {
    %c0_i32 = arith.constant 0 : i32
    %c0_i32_0 = arith.constant 0 : i32
    %c0_i32_1 = arith.constant 0 : i32
    return %c0_i32, %c0_i32_0 : i32, i32
  }
  func.func @transform_3(%arg0: i32) -> (i32, i32) {
    %c0_i32 = arith.constant 0 : i32
    %c0_i32_0 = arith.constant 0 : i32
    %c0_i32_1 = arith.constant 0 : i32
    return %c0_i32, %c0_i32_0 : i32, i32
  }
  func.func @transform_4(%arg0: i32) -> (i32, i32) {
    %c0_i32 = arith.constant 0 : i32
    %c0_i32_0 = arith.constant 0 : i32
    return %c0_i32, %arg0 : i32, i32
  }
}

</mosaic_0001>

<llo_original>
// kernel: tpu_custom_call.1
$region0: #{tpu_custom_call.1}
  #allocation0 [shape = 'u32[]', space=smem, size = 0x4, offset = 0x4, fixed_abs, tag = 'smem constant byte address 0x4 - core index']
  #allocation1 [shape = 'u32[144,128]{1,0:T(1,128)}', space=vmem, size = 0x12000, scoped, tag = 'internal scratch']
  %s0 = inlined_call_operand.vmem [shape: f32[256,16], index: 0, kind: input, shape index: {}]
  %s1 = inlined_call_operand.vmem [shape: f32[1,16], index: 1, kind: input, shape index: {}]
  %s2 = inlined_call_operand.vmem [shape: f32[1,16], index: 2, kind: input, shape index: {}]
  %s3 = inlined_call_operand.vmem [shape: f32[16,4], index: 3, kind: input, shape index: {}]
  %s4 = inlined_call_operand.hbm [shape: f32[4,256], index: 4, kind: output, shape index: {}]
  %s5 = sld [smem:[#allocation0]]
  $region26: #{tpu_custom_call.1} parent=0
    _
  %s7 = ssub.s32 1, %s5
  %s8 = scalar_select 0, %s7, %s5
  $region1: #{tpu_custom_call.1} parent=0
    #allocation2 [shape = 'u8[4096]{0}', space=vmem, size = 0x1000, scoped, tag = 'output window, operand 0, single buffered']
    #allocation3 [shape = 's32[1]{0}', space=sflag, size = 0x4, scoped, tag = 'scoped memory for tpu_custom_call.1']
    %9 = vsyncpa [#allocation3], 0
    // Predicated region
    $region2: #{tpu_custom_call.1} parent=1 // pred_check
      _
    $region3: #{tpu_custom_call.1} parent=1 // pred_check_branch
      %11 = sbr.rel (0) target = $region5
    $region4: #{tpu_custom_call.1} parent=1 // pred_region
      _
    $region5: #{tpu_custom_call.1} parent=1 // pred_fallthru
      _
    // Predicated region
    $region6: #{tpu_custom_call.1} parent=1 // pred_check
      _
    $region7: #{tpu_custom_call.1} parent=1 // pred_check_branch
      %13 = sbr.rel (0) target = $region9
    $region8: #{tpu_custom_call.1} parent=1 // pred_region
      _
    $region9: #{tpu_custom_call.1} parent=1 // pred_fallthru
      _
    // Predicated region
    $region10: #{tpu_custom_call.1} parent=1 // pred_check
      _
    $region11: #{tpu_custom_call.1} parent=1 // pred_check_branch
      %15 = sbr.rel (0) target = $region13
    $region12: #{tpu_custom_call.1} parent=1 // pred_region
      _
    $region13: #{tpu_custom_call.1} parent=1 // pred_fallthru
      _
    // Predicated region
    $region14: #{tpu_custom_call.1} parent=1 // pred_check
      _
    $region15: #{tpu_custom_call.1} parent=1 // pred_check_branch
      %17 = sbr.rel (0) target = $region17
    $region16: #{tpu_custom_call.1} parent=1 // pred_region
      _
    $region17: #{tpu_custom_call.1} parent=1 // pred_fallthru
      _
    %v18 = vld [vmem:[%s0] sm:$0xff]
    %v19 = vld [vmem:[%s0 + $0x8] sm:$0xff]
    %v20 = vld [vmem:[%s0 + $0x10] sm:$0xff]
    %v21 = vld [vmem:[%s0 + $0x18] sm:$0xff]
    %v22 = vld [vmem:[%s0 + $0x20] sm:$0xff]
    %v23 = vld [vmem:[%s0 + $0x28] sm:$0xff]
    %v24 = vld [vmem:[%s0 + $0x30] sm:$0xff]
    %v25 = vld [vmem:[%s0 + $0x38] sm:$0xff]
    %v26 = vld [vmem:[%s0 + $0x40] sm:$0xff]
    %v27 = vld [vmem:[%s0 + $0x48] sm:$0xff]
    %v28 = vld [vmem:[%s0 + $0x50] sm:$0xff]
    %v29 = vld [vmem:[%s0 + $0x58] sm:$0xff]
    %v30 = vld [vmem:[%s0 + $0x60] sm:$0xff]
    %v31 = vld [vmem:[%s0 + $0x68] sm:$0xff]
    %v32 = vld [vmem:[%s0 + $0x70] sm:$0xff]
    %v33 = vld [vmem:[%s0 + $0x78] sm:$0xff]
    %v34 = vld [vmem:[%s0 + $0x80] sm:$0xff]
    %v35 = vld [vmem:[%s0 + $0x88] sm:$0xff]
    %v36 = vld [vmem:[%s0 + $0x90] sm:$0xff]
    %v37 = vld [vmem:[%s0 + $0x98] sm:$0xff]
    %v38 = vld [vmem:[%s0 + $0xa0] sm:$0xff]
    %v39 = vld [vmem:[%s0 + $0xa8] sm:$0xff]
    %v40 = vld [vmem:[%s0 + $0xb0] sm:$0xff]
    %v41 = vld [vmem:[%s0 + $0xb8] sm:$0xff]
    %v42 = vld [vmem:[%s0 + $0xc0] sm:$0xff]
    %v43 = vld [vmem:[%s0 + $0xc8] sm:$0xff]
    %v44 = vld [vmem:[%s0 + $0xd0] sm:$0xff]
    %v45 = vld [vmem:[%s0 + $0xd8] sm:$0xff]
    %v46 = vld [vmem:[%s0 + $0xe0] sm:$0xff]
    %v47 = vld [vmem:[%s0 + $0xe8] sm:$0xff]
    %v48 = vld [vmem:[%s0 + $0xf0] sm:$0xff]
    %v49 = vld [vmem:[%s0 + $0xf8] sm:$0xff]
    %v50 = vld [vmem:[%s1] sm:$0x1]
    %v51 = vld [vmem:[%s2] sm:$0x1]
    %vm52 = vcmask 130048
    %v53 = vsel %vm52, %v18, 0.0
    %54 = vadd.xlane.f32.xlu0 %v53
    %v55 = vpop.xlane.xlu0 %54
    %v56 = vsel %vm52, %v19, 0.0
    %57 = vadd.xlane.f32.xlu0 %v56
    %v58 = vpop.xlane.xlu0 %57
    %v59 = vsel %vm52, %v20, 0.0
    %60 = vadd.xlane.f32.xlu0 %v59
    %v61 = vpop.xlane.xlu0 %60
    %v62 = vsel %vm52, %v21, 0.0
    %63 = vadd.xlane.f32.xlu0 %v62
    %v64 = vpop.xlane.xlu0 %63
    %v65 = vsel %vm52, %v22, 0.0
    %66 = vadd.xlane.f32.xlu0 %v65
    %v67 = vpop.xlane.xlu0 %66
    %v68 = vsel %vm52, %v23, 0.0
    %69 = vadd.xlane.f32.xlu0 %v68
    %v70 = vpop.xlane.xlu0 %69
    %v71 = vsel %vm52, %v24, 0.0
    %72 = vadd.xlane.f32.xlu0 %v71
    %v73 = vpop.xlane.xlu0 %72
    %v74 = vsel %vm52, %v25, 0.0
    %75 = vadd.xlane.f32.xlu0 %v74
    %v76 = vpop.xlane.xlu0 %75
    %v77 = vsel %vm52, %v26, 0.0
    %78 = vadd.xlane.f32.xlu0 %v77
    %v79 = vpop.xlane.xlu0 %78
    %v80 = vsel %vm52, %v27, 0.0
    %81 = vadd.xlane.f32.xlu0 %v80
    %v82 = vpop.xlane.xlu0 %81
    %v83 = vsel %vm52, %v28, 0.0
    %84 = vadd.xlane.f32.xlu0 %v83
    %v85 = vpop.xlane.xlu0 %84
    %v86 = vsel %vm52, %v29, 0.0
    %87 = vadd.xlane.f32.xlu0 %v86
    %v88 = vpop.xlane.xlu0 %87
    %v89 = vsel %vm52, %v30, 0.0
    %90 = vadd.xlane.f32.xlu0 %v89
    %v91 = vpop.xlane.xlu0 %90
    %v92 = vsel %vm52, %v31, 0.0
    %93 = vadd.xlane.f32.xlu0 %v92
    %v94 = vpop.xlane.xlu0 %93
    %v95 = vsel %vm52, %v32, 0.0
    %96 = vadd.xlane.f32.xlu0 %v95
    %v97 = vpop.xlane.xlu0 %96
    %v98 = vsel %vm52, %v33, 0.0
    %99 = vadd.xlane.f32.xlu0 %v98
    %v100 = vpop.xlane.xlu0 %99
    %v101 = vsel %vm52, %v34, 0.0
    %102 = vadd.xlane.f32.xlu0 %v101
    %v103 = vpop.xlane.xlu0 %102
    %v104 = vsel %vm52, %v35, 0.0
    %105 = vadd.xlane.f32.xlu0 %v104
    %v106 = vpop.xlane.xlu0 %105
    %v107 = vsel %vm52, %v36, 0.0
    %108 = vadd.xlane.f32.xlu0 %v107
    %v109 = vpop.xlane.xlu0 %108
    %v110 = vsel %vm52, %v37, 0.0
    %111 = vadd.xlane.f32.xlu0 %v110
    %v112 = vpop.xlane.xlu0 %111
    %v113 = vsel %vm52, %v38, 0.0
    %114 = vadd.xlane.f32.xlu0 %v113
    %v115 = vpop.xlane.xlu0 %114
    %v116 = vsel %vm52, %v39, 0.0
    %117 = vadd.xlane.f32.xlu0 %v116
    %v118 = vpop.xlane.xlu0 %117
    %v119 = vsel %vm52, %v40, 0.0
    %120 = vadd.xlane.f32.xlu0 %v119
    %v121 = vpop.xlane.xlu0 %120
    %v122 = vsel %vm52, %v41, 0.0
    %123 = vadd.xlane.f32.xlu0 %v122
    %v124 = vpop.xlane.xlu0 %123
    %v125 = vsel %vm52, %v42, 0.0
    %126 = vadd.xlane.f32.xlu0 %v125
    %v127 = vpop.xlane.xlu0 %126
    %v128 = vsel %vm52, %v43, 0.0
    %129 = vadd.xlane.f32.xlu0 %v128
    %v130 = vpop.xlane.xlu0 %129
    %v131 = vsel %vm52, %v44, 0.0
    %132 = vadd.xlane.f32.xlu0 %v131
    %v133 = vpop.xlane.xlu0 %132
    %v134 = vsel %vm52, %v45, 0.0
    %135 = vadd.xlane.f32.xlu0 %v134
    %v136 = vpop.xlane.xlu0 %135
    %v137 = vsel %vm52, %v46, 0.0
    %138 = vadd.xlane.f32.xlu0 %v137
    %v139 = vpop.xlane.xlu0 %138
    %v140 = vsel %vm52, %v47, 0.0
    %141 = vadd.xlane.f32.xlu0 %v140
    %v142 = vpop.xlane.xlu0 %141
    %v143 = vsel %vm52, %v48, 0.0
    %144 = vadd.xlane.f32.xlu0 %v143
    %v145 = vpop.xlane.xlu0 %144
    %v146 = vsel %vm52, %v49, 0.0
    %147 = vadd.xlane.f32.xlu0 %v146
    %v148 = vpop.xlane.xlu0 %147
    %v149 = vrcp.pop 16.0
    %v150 = vmul.f32 %v55, %v149
    %v151 = vmul.f32 %v58, %v149
    %v152 = vmul.f32 %v61, %v149
    %v153 = vmul.f32 %v64, %v149
    %v154 = vmul.f32 %v67, %v149
    %v155 = vmul.f32 %v70, %v149
    %v156 = vmul.f32 %v73, %v149
    %v157 = vmul.f32 %v76, %v149
    %v158 = vmul.f32 %v79, %v149
    %v159 = vmul.f32 %v82, %v149
    %v160 = vmul.f32 %v85, %v149
    %v161 = vmul.f32 %v88, %v149
    %v162 = vmul.f32 %v91, %v149
    %v163 = vmul.f32 %v94, %v149
    %v164 = vmul.f32 %v97, %v149
    %v165 = vmul.f32 %v100, %v149
    %v166 = vmul.f32 %v103, %v149
    %v167 = vmul.f32 %v106, %v149
    %v168 = vmul.f32 %v109, %v149
    %v169 = vmul.f32 %v112, %v149
    %v170 = vmul.f32 %v115, %v149
    %v171 = vmul.f32 %v118, %v149
    %v172 = vmul.f32 %v121, %v149
    %v173 = vmul.f32 %v124, %v149
    %v174 = vmul.f32 %v127, %v149
    %v175 = vmul.f32 %v130, %v149
    %v176 = vmul.f32 %v133, %v149
    %v177 = vmul.f32 %v136, %v149
    %v178 = vmul.f32 %v139, %v149
    %v179 = vmul.f32 %v142, %v149
    %v180 = vmul.f32 %v145, %v149
    %v181 = vmul.f32 %v148, %v149
    %v182 = vsub.f32 %v18, %v150
    %v183 = vsub.f32 %v19, %v151
    %v184 = vsub.f32 %v20, %v152
    %v185 = vsub.f32 %v21, %v153
    %v186 = vsub.f32 %v22, %v154
    %v187 = vsub.f32 %v23, %v155
    %v188 = vsub.f32 %v24, %v156
    %v189 = vsub.f32 %v25, %v157
    %v190 = vsub.f32 %v26, %v158
    %v191 = vsub.f32 %v27, %v159
    %v192 = vsub.f32 %v28, %v160
    %v193 = vsub.f32 %v29, %v161
    %v194 = vsub.f32 %v30, %v162
    %v195 = vsub.f32 %v31, %v163
    %v196 = vsub.f32 %v32, %v164
    %v197 = vsub.f32 %v33, %v165
    %v198 = vsub.f32 %v34, %v166
    %v199 = vsub.f32 %v35, %v167
    %v200 = vsub.f32 %v36, %v168
    %v201 = vsub.f32 %v37, %v169
    %v202 = vsub.f32 %v38, %v170
    %v203 = vsub.f32 %v39, %v171
    %v204 = vsub.f32 %v40, %v172
    %v205 = vsub.f32 %v41, %v173
    %v206 = vsub.f32 %v42, %v174
    %v207 = vsub.f32 %v43, %v175
    %v208 = vsub.f32 %v44, %v176
    %v209 = vsub.f32 %v45, %v177
    %v210 = vsub.f32 %v46, %v178
    %v211 = vsub.f32 %v47, %v179
    %v212 = vsub.f32 %v48, %v180
    %v213 = vsub.f32 %v49, %v181
    %v214 = vmul.f32 %v182, %v182
    %v215 = vmul.f32 %v183, %v183
    %v216 = vmul.f32 %v184, %v184
    %v217 = vmul.f32 %v185, %v185
    %v218 = vmul.f32 %v186, %v186
    %v219 = vmul.f32 %v187, %v187
    %v220 = vmul.f32 %v188, %v188
    %v221 = vmul.f32 %v189, %v189
    %v222 = vmul.f32 %v190, %v190
    %v223 = vmul.f32 %v191, %v191
    %v224 = vmul.f32 %v192, %v192
    %v225 = vmul.f32 %v193, %v193
    %v226 = vmul.f32 %v194, %v194
    %v227 = vmul.f32 %v195, %v195
    %v228 = vmul.f32 %v196, %v196
    %v229 = vmul.f32 %v197, %v197
    %v230 = vmul.f32 %v198, %v198
    %v231 = vmul.f32 %v199, %v199
    %v232 = vmul.f32 %v200, %v200
    %v233 = vmul.f32 %v201, %v201
    %v234 = vmul.f32 %v202, %v202
    %v235 = vmul.f32 %v203, %v203
    %v236 = vmul.f32 %v204, %v204
    %v237 = vmul.f32 %v205, %v205
    %v238 = vmul.f32 %v206, %v206
    %v239 = vmul.f32 %v207, %v207
    %v240 = vmul.f32 %v208, %v208
    %v241 = vmul.f32 %v209, %v209
    %v242 = vmul.f32 %v210, %v210
    %v243 = vmul.f32 %v211, %v211
    %v244 = vmul.f32 %v212, %v212
    %v245 = vmul.f32 %v213, %v213
    %v246 = vsel %vm52, %v214, 0.0
    %247 = vadd.xlane.f32.xlu0 %v246
    %v248 = vpop.xlane.xlu0 %247
    %v249 = vsel %vm52, %v215, 0.0
    %250 = vadd.xlane.f32.xlu0 %v249
    %v251 = vpop.xlane.xlu0 %250
    %v252 = vsel %vm52, %v216, 0.0
    %253 = vadd.xlane.f32.xlu0 %v252
    %v254 = vpop.xlane.xlu0 %253
    %v255 = vsel %vm52, %v217, 0.0
    %256 = vadd.xlane.f32.xlu0 %v255
    %v257 = vpop.xlane.xlu0 %256
    %v258 = vsel %vm52, %v218, 0.0
    %259 = vadd.xlane.f32.xlu0 %v258
    %v260 = vpop.xlane.xlu0 %259
    %v261 = vsel %vm52, %v219, 0.0
    %262 = vadd.xlane.f32.xlu0 %v261
    %v263 = vpop.xlane.xlu0 %262
    %v264 = vsel %vm52, %v220, 0.0
    %265 = vadd.xlane.f32.xlu0 %v264
    %v266 = vpop.xlane.xlu0 %265
    %v267 = vsel %vm52, %v221, 0.0
    %268 = vadd.xlane.f32.xlu0 %v267
    %v269 = vpop.xlane.xlu0 %268
    %v270 = vsel %vm52, %v222, 0.0
    %271 = vadd.xlane.f32.xlu0 %v270
    %v272 = vpop.xlane.xlu0 %271
    %v273 = vsel %vm52, %v223, 0.0
    %274 = vadd.xlane.f32.xlu0 %v273
    %v275 = vpop.xlane.xlu0 %274
    %v276 = vsel %vm52, %v224, 0.0
    %277 = vadd.xlane.f32.xlu0 %v276
    %v278 = vpop.xlane.xlu0 %277
    %v279 = vsel %vm52, %v225, 0.0
    %280 = vadd.xlane.f32.xlu0 %v279
    %v281 = vpop.xlane.xlu0 %280
    %v282 = vsel %vm52, %v226, 0.0
    %283 = vadd.xlane.f32.xlu0 %v282
    %v284 = vpop.xlane.xlu0 %283
    %v285 = vsel %vm52, %v227, 0.0
    %286 = vadd.xlane.f32.xlu0 %v285
    %v287 = vpop.xlane.xlu0 %286
    %v288 = vsel %vm52, %v228, 0.0
    %289 = vadd.xlane.f32.xlu0 %v288
    %v290 = vpop.xlane.xlu0 %289
    %v291 = vsel %vm52, %v229, 0.0
    %292 = vadd.xlane.f32.xlu0 %v291
    %v293 = vpop.xlane.xlu0 %292
    %v294 = vsel %vm52, %v230, 0.0
    %295 = vadd.xlane.f32.xlu0 %v294
    %v296 = vpop.xlane.xlu0 %295
    %v297 = vsel %vm52, %v231, 0.0
    %298 = vadd.xlane.f32.xlu0 %v297
    %v299 = vpop.xlane.xlu0 %298
    %v300 = vsel %vm52, %v232, 0.0
    %301 = vadd.xlane.f32.xlu0 %v300
    %v302 = vpop.xlane.xlu0 %301
    %v303 = vsel %vm52, %v233, 0.0
    %304 = vadd.xlane.f32.xlu0 %v303
    %v305 = vpop.xlane.xlu0 %304
    %v306 = vsel %vm52, %v234, 0.0
    %307 = vadd.xlane.f32.xlu0 %v306
    %v308 = vpop.xlane.xlu0 %307
    %v309 = vsel %vm52, %v235, 0.0
    %310 = vadd.xlane.f32.xlu0 %v309
    %v311 = vpop.xlane.xlu0 %310
    %v312 = vsel %vm52, %v236, 0.0
    %313 = vadd.xlane.f32.xlu0 %v312
    %v314 = vpop.xlane.xlu0 %313
    %v315 = vsel %vm52, %v237, 0.0
    %316 = vadd.xlane.f32.xlu0 %v315
    %v317 = vpop.xlane.xlu0 %316
    %v318 = vsel %vm52, %v238, 0.0
    %319 = vadd.xlane.f32.xlu0 %v318
    %v320 = vpop.xlane.xlu0 %319
    %v321 = vsel %vm52, %v239, 0.0
    %322 = vadd.xlane.f32.xlu0 %v321
    %v323 = vpop.xlane.xlu0 %322
    %v324 = vsel %vm52, %v240, 0.0
    %325 = vadd.xlane.f32.xlu0 %v324
    %v326 = vpop.xlane.xlu0 %325
    %v327 = vsel %vm52, %v241, 0.0
    %328 = vadd.xlane.f32.xlu0 %v327
    %v329 = vpop.xlane.xlu0 %328
    %v330 = vsel %vm52, %v242, 0.0
    %331 = vadd.xlane.f32.xlu0 %v330
    %v332 = vpop.xlane.xlu0 %331
    %v333 = vsel %vm52, %v243, 0.0
    %334 = vadd.xlane.f32.xlu0 %v333
    %v335 = vpop.xlane.xlu0 %334
    %v336 = vsel %vm52, %v244, 0.0
    %337 = vadd.xlane.f32.xlu0 %v336
    %v338 = vpop.xlane.xlu0 %337
    %v339 = vsel %vm52, %v245, 0.0
    %340 = vadd.xlane.f32.xlu0 %v339
    %v341 = vpop.xlane.xlu0 %340
    %v342 = vmul.f32 %v248, %v149
    %v343 = vmul.f32 %v251, %v149
    %v344 = vmul.f32 %v254, %v149
    %v345 = vmul.f32 %v257, %v149
    %v346 = vmul.f32 %v260, %v149
    %v347 = vmul.f32 %v263, %v149
    %v348 = vmul.f32 %v266, %v149
    %v349 = vmul.f32 %v269, %v149
    %v350 = vmul.f32 %v272, %v149
    %v351 = vmul.f32 %v275, %v149
    %v352 = vmul.f32 %v278, %v149
    %v353 = vmul.f32 %v281, %v149
    %v354 = vmul.f32 %v284, %v149
    %v355 = vmul.f32 %v287, %v149
    %v356 = vmul.f32 %v290, %v149
    %v357 = vmul.f32 %v293, %v149
    %v358 = vmul.f32 %v296, %v149
    %v359 = vmul.f32 %v299, %v149
    %v360 = vmul.f32 %v302, %v149
    %v361 = vmul.f32 %v305, %v149
    %v362 = vmul.f32 %v308, %v149
    %v363 = vmul.f32 %v311, %v149
    %v364 = vmul.f32 %v314, %v149
    %v365 = vmul.f32 %v317, %v149
    %v366 = vmul.f32 %v320, %v149
    %v367 = vmul.f32 %v323, %v149
    %v368 = vmul.f32 %v326, %v149
    %v369 = vmul.f32 %v329, %v149
    %v370 = vmul.f32 %v332, %v149
    %v371 = vmul.f32 %v335, %v149
    %v372 = vmul.f32 %v338, %v149
    %v373 = vmul.f32 %v341, %v149
    %v374 = vadd.f32 %v342, 1e-05
    %v375 = vadd.f32 %v343, 1e-05
    %v376 = vadd.f32 %v344, 1e-05
    %v377 = vadd.f32 %v345, 1e-05
    %v378 = vadd.f32 %v346, 1e-05
    %v379 = vadd.f32 %v347, 1e-05
    %v380 = vadd.f32 %v348, 1e-05
    %v381 = vadd.f32 %v349, 1e-05
    %v382 = vadd.f32 %v350, 1e-05
    %v383 = vadd.f32 %v351, 1e-05
    %v384 = vadd.f32 %v352, 1e-05
    %v385 = vadd.f32 %v353, 1e-05
    %v386 = vadd.f32 %v354, 1e-05
    %v387 = vadd.f32 %v355, 1e-05
    %v388 = vadd.f32 %v356, 1e-05
    %v389 = vadd.f32 %v357, 1e-05
    %v390 = vadd.f32 %v358, 1e-05
    %v391 = vadd.f32 %v359, 1e-05
    %v392 = vadd.f32 %v360, 1e-05
    %v393 = vadd.f32 %v361, 1e-05
    %v394 = vadd.f32 %v362, 1e-05
    %v395 = vadd.f32 %v363, 1e-05
    %v396 = vadd.f32 %v364, 1e-05
    %v397 = vadd.f32 %v365, 1e-05
    %v398 = vadd.f32 %v366, 1e-05
    %v399 = vadd.f32 %v367, 1e-05
    %v400 = vadd.f32 %v368, 1e-05
    %v401 = vadd.f32 %v369, 1e-05
    %v402 = vadd.f32 %v370, 1e-05
    %v403 = vadd.f32 %v371, 1e-05
    %v404 = vadd.f32 %v372, 1e-05
    %v405 = vadd.f32 %v373, 1e-05
    %v406 = vrsqrt.pop %v374
    %v407 = vrsqrt.pop %v375
    %v408 = vrsqrt.pop %v376
    %v409 = vrsqrt.pop %v377
    %v410 = vrsqrt.pop %v378
    %v411 = vrsqrt.pop %v379
    %v412 = vrsqrt.pop %v380
    %v413 = vrsqrt.pop %v381
    %v414 = vrsqrt.pop %v382
    %v415 = vrsqrt.pop %v383
    %v416 = vrsqrt.pop %v384
    %v417 = vrsqrt.pop %v385
    %v418 = vrsqrt.pop %v386
    %v419 = vrsqrt.pop %v387
    %v420 = vrsqrt.pop %v388
    %v421 = vrsqrt.pop %v389
    %v422 = vrsqrt.pop %v390
    %v423 = vrsqrt.pop %v391
    %v424 = vrsqrt.pop %v392
    %v425 = vrsqrt.pop %v393
    %v426 = vrsqrt.pop %v394
    %v427 = vrsqrt.pop %v395
    %v428 = vrsqrt.pop %v396
    %v429 = vrsqrt.pop %v397
    %v430 = vrsqrt.pop %v398
    %v431 = vrsqrt.pop %v399
    %v432 = vrsqrt.pop %v400
    %v433 = vrsqrt.pop %v401
    %v434 = vrsqrt.pop %v402
    %v435 = vrsqrt.pop %v403
    %v436 = vrsqrt.pop %v404
    %v437 = vrsqrt.pop %v405
    %v438 = vmul.f32 %v182, %v406
    %v439 = vmul.f32 %v183, %v407
    %v440 = vmul.f32 %v184, %v408
    %v441 = vmul.f32 %v185, %v409
    %v442 = vmul.f32 %v186, %v410
    %v443 = vmul.f32 %v187, %v411
    %v444 = vmul.f32 %v188, %v412
    %v445 = vmul.f32 %v189, %v413
    %v446 = vmul.f32 %v190, %v414
    %v447 = vmul.f32 %v191, %v415
    %v448 = vmul.f32 %v192, %v416
    %v449 = vmul.f32 %v193, %v417
    %v450 = vmul.f32 %v194, %v418
    %v451 = vmul.f32 %v195, %v419
    %v452 = vmul.f32 %v196, %v420
    %v453 = vmul.f32 %v197, %v421
    %v454 = vmul.f32 %v198, %v422
    %v455 = vmul.f32 %v199, %v423
    %v456 = vmul.f32 %v200, %v424
    %v457 = vmul.f32 %v201, %v425
    %v458 = vmul.f32 %v202, %v426
    %v459 = vmul.f32 %v203, %v427
    %v460 = vmul.f32 %v204, %v428
    %v461 = vmul.f32 %v205, %v429
    %v462 = vmul.f32 %v206, %v430
    %v463 = vmul.f32 %v207, %v431
    %v464 = vmul.f32 %v208, %v432
    %v465 = vmul.f32 %v209, %v433
    %v466 = vmul.f32 %v210, %v434
    %v467 = vmul.f32 %v211, %v435
    %v468 = vmul.f32 %v212, %v436
    %v469 = vmul.f32 %v213, %v437
    %v471 = vlaneseq
    %v472 = vshrl.u32 %v471, 7
    %v473 = vsub.s32 0, %v472
    %v474 = vrot.slane %v50, %v473
    %v476 = vmul.f32 %v438, %v474
    %v477 = vmul.f32 %v439, %v474
    %v478 = vmul.f32 %v440, %v474
    %v479 = vmul.f32 %v441, %v474
    %v480 = vmul.f32 %v442, %v474
    %v481 = vmul.f32 %v443, %v474
    %v482 = vmul.f32 %v444, %v474
    %v483 = vmul.f32 %v445, %v474
    %v484 = vmul.f32 %v446, %v474
    %v485 = vmul.f32 %v447, %v474
    %v486 = vmul.f32 %v448, %v474
    %v487 = vmul.f32 %v449, %v474
    %v488 = vmul.f32 %v450, %v474
    %v489 = vmul.f32 %v451, %v474
    %v490 = vmul.f32 %v452, %v474
    %v491 = vmul.f32 %v453, %v474
    %v492 = vmul.f32 %v454, %v474
    %v493 = vmul.f32 %v455, %v474
    %v494 = vmul.f32 %v456, %v474
    %v495 = vmul.f32 %v457, %v474
    %v496 = vmul.f32 %v458, %v474
    %v497 = vmul.f32 %v459, %v474
    %v498 = vmul.f32 %v460, %v474
    %v499 = vmul.f32 %v461, %v474
    %v500 = vmul.f32 %v462, %v474
    %v501 = vmul.f32 %v463, %v474
    %v502 = vmul.f32 %v464, %v474
    %v503 = vmul.f32 %v465, %v474
    %v504 = vmul.f32 %v466, %v474
    %v505 = vmul.f32 %v467, %v474
    %v506 = vmul.f32 %v468, %v474
    %v507 = vmul.f32 %v469, %v474
    %v509 = vlaneseq
    %v510 = vshrl.u32 %v509, 7
    %v511 = vsub.s32 0, %v510
    %v512 = vrot.slane %v51, %v511
    %v514 = vadd.f32 %v476, %v512
    %v515 = vadd.f32 %v477, %v512
    %v516 = vadd.f32 %v478, %v512
    %v517 = vadd.f32 %v479, %v512
    %v518 = vadd.f32 %v480, %v512
    %v519 = vadd.f32 %v481, %v512
    %v520 = vadd.f32 %v482, %v512
    %v521 = vadd.f32 %v483, %v512
    %v522 = vadd.f32 %v484, %v512
    %v523 = vadd.f32 %v485, %v512
    %v524 = vadd.f32 %v486, %v512
    %v525 = vadd.f32 %v487, %v512
    %v526 = vadd.f32 %v488, %v512
    %v527 = vadd.f32 %v489, %v512
    %v528 = vadd.f32 %v490, %v512
    %v529 = vadd.f32 %v491, %v512
    %v530 = vadd.f32 %v492, %v512
    %v531 = vadd.f32 %v493, %v512
    %v532 = vadd.f32 %v494, %v512
    %v533 = vadd.f32 %v495, %v512
    %v534 = vadd.f32 %v496, %v512
    %v535 = vadd.f32 %v497, %v512
    %v536 = vadd.f32 %v498, %v512
    %v537 = vadd.f32 %v499, %v512
    %v538 = vadd.f32 %v500, %v512
    %v539 = vadd.f32 %v501, %v512
    %v540 = vadd.f32 %v502, %v512
    %v541 = vadd.f32 %v503, %v512
    %v542 = vadd.f32 %v504, %v512
    %v543 = vadd.f32 %v505, %v512
    %v544 = vadd.f32 %v506, %v512
    %v545 = vadd.f32 %v507, %v512
    %v546 = vld [vmem:[%s3] sm:$0xff]
    %v547 = vld [vmem:[%s3 + $0x8] sm:$0xff]
    %548 = vxpose.xlu0.b32.start [1/16] %v546, 128
    %549 = vxpose.xlu0.b32.cont [2/16] %v547, 128
    %550 = vxpose.xlu0.b32.cont [3/16] 0.0, 128
    %551 = vxpose.xlu0.b32.cont [4/16] 0.0, 128
    %552 = vxpose.xlu0.b32.cont [5/16] 0.0, 128
    %553 = vxpose.xlu0.b32.cont [6/16] 0.0, 128
    %554 = vxpose.xlu0.b32.cont [7/16] 0.0, 128
    %555 = vxpose.xlu0.b32.cont [8/16] 0.0, 128
    %556 = vxpose.xlu0.b32.cont [9/16] 0.0, 128
    %557 = vxpose.xlu0.b32.cont [10/16] 0.0, 128
    %558 = vxpose.xlu0.b32.cont [11/16] 0.0, 128
    %559 = vxpose.xlu0.b32.cont [12/16] 0.0, 128
    %560 = vxpose.xlu0.b32.cont [13/16] 0.0, 128
    %561 = vxpose.xlu0.b32.cont [14/16] 0.0, 128
    %562 = vxpose.xlu0.b32.cont [15/16] 0.0, 128
    %563 = vxpose.xlu0.b32.end [16/16] 0.0, 128
    %v564 = vpop.trf.xlu0
    %v565 = vpop.trf.xlu0
    %v566 = vpop.trf.xlu0
    %v567 = vpop.trf.xlu0
    %v568 = vpop.trf.xlu0
    %v569 = vpop.trf.xlu0
    %v570 = vpop.trf.xlu0
    %v571 = vpop.trf.xlu0
    %v572 = vpop.trf.xlu0
    %v573 = vpop.trf.xlu0
    %v574 = vpop.trf.xlu0
    %v575 = vpop.trf.xlu0
    %v576 = vpop.trf.xlu0
    %v577 = vpop.trf.xlu0
    %v578 = vpop.trf.xlu0
    %v579 = vpop.trf.xlu0
    %v581 = vsel %vm52, %v564, 0
    %v584 = vsel %vm52, %v514, 0
    %v587 = vsel %vm52, %v515, 0
    %v590 = vsel %vm52, %v516, 0
    %v593 = vsel %vm52, %v517, 0
    %v596 = vsel %vm52, %v518, 0
    %v599 = vsel %vm52, %v519, 0
    %v602 = vsel %vm52, %v520, 0
    %v605 = vsel %vm52, %v521, 0
    %v608 = vsel %vm52, %v522, 0
    %v611 = vsel %vm52, %v523, 0
    %v614 = vsel %vm52, %v524, 0
    %v617 = vsel %vm52, %v525, 0
    %v620 = vsel %vm52, %v526, 0
    %v623 = vsel %vm52, %v527, 0
    %v626 = vsel %vm52, %v528, 0
    %v629 = vsel %vm52, %v529, 0
    %v632 = vsel %vm52, %v530, 0
    %v635 = vsel %vm52, %v531, 0
    %v638 = vsel %vm52, %v532, 0
    %v641 = vsel %vm52, %v533, 0
    %v644 = vsel %vm52, %v534, 0
    %v647 = vsel %vm52, %v535, 0
    %v650 = vsel %vm52, %v536, 0
    %v653 = vsel %vm52, %v537, 0
    %v656 = vsel %vm52, %v538, 0
    %v659 = vsel %vm52, %v539, 0
    %v662 = vsel %vm52, %v540, 0
    %v665 = vsel %vm52, %v541, 0
    %v668 = vsel %vm52, %v542, 0
    %v671 = vsel %vm52, %v543, 0
    %v674 = vsel %vm52, %v544, 0
    %v677 = vsel %vm52, %v545, 0
    %679 = vmatprep.subr.mxu0 0.0
    %680 = vmatpush1.xpose.msra.mxu0 %v584
    %681 = vmatprep.subr.mxu0 0.0
    %682 = vmatpush1.xpose.msra.mxu0 %v587
    %683 = vmatprep.subr.mxu0 0.0
    %684 = vmatpush1.xpose.msra.mxu0 %v590
    %685 = vmatprep.subr.mxu0 0.0
    %686 = vmatpush1.xpose.msra.mxu0 %v593
    %687 = vmatprep.subr.mxu0 0.0
    %688 = vmatpush1.xpose.msra.mxu0 %v596
    %689 = vmatprep.subr.mxu0 0.0
    %690 = vmatpush1.xpose.msra.mxu0 %v599
    %691 = vmatprep.subr.mxu0 0.0
    %692 = vmatpush1.xpose.msra.mxu0 %v602
    %693 = vmatprep.subr.mxu0 0.0
    %694 = vmatpush1.xpose.msra.mxu0 %v605
    %695 = vmatprep.subr.mxu0 0.0
    %696 = vmatpush1.xpose.msra.mxu0 %v608
    %697 = vmatprep.subr.mxu0 0.0
    %698 = vmatpush1.xpose.msra.mxu0 %v611
    %699 = vmatprep.subr.mxu0 0.0
    %700 = vmatpush1.xpose.msra.mxu0 %v614
    %701 = vmatprep.subr.mxu0 0.0
    %702 = vmatpush1.xpose.msra.mxu0 %v617
    %703 = vmatprep.subr.mxu0 0.0
    %704 = vmatpush1.xpose.msra.mxu0 %v620
    %705 = vmatprep.subr.mxu0 0.0
    %706 = vmatpush1.xpose.msra.mxu0 %v623
    %707 = vmatprep.subr.mxu0 0.0
    %708 = vmatpush1.xpose.msra.mxu0 %v626
    %709 = vmatprep.subr.mxu0 0.0
    %710 = vmatpush1.xpose.msra.mxu0 %v629
    %711 = vmatprep.subr.mxu0 0.0
    %712 = vmatpush1.xpose.msra.mxu0 %v632
    %713 = vmatprep.subr.mxu0 0.0
    %714 = vmatpush1.xpose.msra.mxu0 %v635
    %715 = vmatprep.subr.mxu0 0.0
    %716 = vmatpush1.xpose.msra.mxu0 %v638
    %717 = vmatprep.subr.mxu0 0.0
    %718 = vmatpush1.xpose.msra.mxu0 %v641
    %719 = vmatprep.subr.mxu0 0.0
    %720 = vmatpush1.xpose.msra.mxu0 %v644
    %721 = vmatprep.subr.mxu0 0.0
    %722 = vmatpush1.xpose.msra.mxu0 %v647
    %723 = vmatprep.subr.mxu0 0.0
    %724 = vmatpush1.xpose.msra.mxu0 %v650
    %725 = vmatprep.subr.mxu0 0.0
    %726 = vmatpush1.xpose.msra.mxu0 %v653
    %727 = vmatprep.subr.mxu0 0.0
    %728 = vmatpush1.xpose.msra.mxu0 %v656
    %729 = vmatprep.subr.mxu0 0.0
    %730 = vmatpush1.xpose.msra.mxu0 %v659
    %731 = vmatprep.subr.mxu0 0.0
    %732 = vmatpush1.xpose.msra.mxu0 %v662
    %733 = vmatprep.subr.mxu0 0.0
    %734 = vmatpush1.xpose.msra.mxu0 %v665
    %735 = vmatprep.subr.mxu0 0.0
    %736 = vmatpush1.xpose.msra.mxu0 %v668
    %737 = vmatprep.subr.mxu0 0.0
    %738 = vmatpush1.xpose.msra.mxu0 %v671
    %739 = vmatprep.subr.mxu0 0.0
    %740 = vmatpush1.xpose.msra.mxu0 %v674
    %741 = vmatprep.subr.mxu0 0.0
    %742 = vmatpush1.xpose.msra.mxu0 %v677
    %743 = vmatprep.mubr.f32.mxu0 0.0
    %744 = vmatmul.mubr.f32.gmra.mrb[0].mxu0 %v581
    %v745 = vpop.f32.mrb[0].mxu0
    %v746 = vadd.f32 0.0, %v745
    %v747 = vpop.f32.mrb[0].mxu0
    %v748 = vadd.f32 0.0, %v747
    %749 = vdwg.mxu0
    %v752 = vcombine.low %v746, %v748
    %754 = vst [vmem:[#allocation2] sm:$0xff] %v752
    // Predicated region
    $region18: #{tpu_custom_call.1} parent=1 // pred_check
      _
    $region19: #{tpu_custom_call.1} parent=1 // pred_check_branch
      %756 = sbr.rel (0) target = $region21
    $region20: #{tpu_custom_call.1} parent=1 // pred_region
      %s758 = ssub.s32 128, 128
      %759 = vsyncadd [#allocation3], %s758
      %s761 = sshll.u32 [#allocation2], 4
      %s762 = int_to_ptr.vmem [resolvable:$true] %s761
      %764 = dma.vmem_to_hbm [thread:$0]  %s762, 128, %s4, [#allocation3]
    $region21: #{tpu_custom_call.1} parent=1 // pred_fallthru
      _
    // Predicated region
    $region22: #{tpu_custom_call.1} parent=1 // pred_check
      _
    $region23: #{tpu_custom_call.1} parent=1 // pred_check_branch
      %766 = sbr.rel (0) target = $region25
    $region24: #{tpu_custom_call.1} parent=1 // pred_region
      %767 = dma.done [#allocation3], 128
    $region25: #{tpu_custom_call.1} parent=1 // pred_fallthru
      _
    %768 = vsyncpa [#allocation3], 1

</llo_original>
